<compile_context>
chip_gen: v6e
topology: v6e:2x2x1
jax: 0.10.0
libtpu: 0.0.40
codegen_flags: <defaults>
</compile_context>

<pallas_src>
import jax
import jax.numpy as jnp
from jax.experimental import pallas as pl
from jax.experimental.pallas import tpu as pltpu

LANE = 128     # lane width (last dim of a vreg)
SUBLANE = 8    # sublane width (second-to-last dim of a f32 vreg)


def dense_net_size_heuristic(input_size: int, output_size: int, multiplier: float) -> int:
    return int(multiplier * (input_size + output_size))


def _round_up(x: int, m: int) -> int:
    return ((x + m - 1) // m) * m


def _gelu(x, approximate: bool):
    if approximate:
        # tanh-form GELU -> EUP (separate bundle slot, nearly free next to MXU/VPU).
        return jax.nn.gelu(x, approximate=True)
    # torch.nn.GELU() default is the exact erf formulation.
    return 0.5 * x * (1.0 + jax.lax.erf(x * (2.0 ** -0.5)))


def _make_mlp_kernel(n_layers: int, compute_dtype, gelu_approximate: bool):
    """Builds kernel(x_ref, w0, b0, ..., wL, bL, out_ref): whole MLP in one kernel."""

    def kernel(x_ref, *refs):
        out_ref = refs[-1]
        params = refs[:-1]

        # MXU operands in compute_dtype (bf16 on v6e/v7x for 2x MXU throughput),
        # accumulation / bias-add / GELU always in f32 (v5e VPU/EUP have no bf16).
        h = x_ref[...].astype(compute_dtype)
        for i in range(n_layers):
            w = params[2 * i][...].astype(compute_dtype)
            b = params[2 * i + 1][...]                     # f32 bias, broadcast over rows
            y = jnp.dot(h, w, preferred_element_type=jnp.float32) + b
            if i < n_layers - 1:
                h = _gelu(y, gelu_approximate).astype(compute_dtype)
            else:
                h = y                                      # final linear stays f32
        out_ref[...] = h.astype(out_ref.dtype)

    return kernel


def dense_nn_forward(x, weights, biases, *, block_b=None,
                     compute_dtype=jnp.float32, gelu_approximate=False):
    """Forward pass of dense_nn.

    x: (B, input_size) f32.
    weights[i]: (fan_in, fan_out) f32 (transposed vs. PyTorch).
    biases[i]:  (1, fan_out) f32.
    """
    B, in_dim = x.shape
    n_layers = len(weights)
    out_dim = weights[-1].shape[1]

    # ---- pad every feature dim to the 128-lane width (zeros -> exact result) ----
    dims = [in_dim] + [w.shape[1] for w in weights]
    pdims = [_round_up(d, LANE) for d in dims]

    w_p, b_p = [], []
    for i, (w, b) in enumerate(zip(weights, biases)):
        wp = jnp.zeros((pdims[i], pdims[i + 1]), jnp.float32).at[: w.shape[0], : w.shape[1]].set(w)
        bp = jnp.zeros((1, pdims[i + 1]), jnp.float32).at[:, : b.shape[1]].set(b)
        w_p.append(wp)
        b_p.append(bp)

    # ---- row tiling: many grid steps for big B, sublane-aligned, pad-don't-assert ----
    if block_b is None:
        block_b = min(_round_up(B, SUBLANE), 512)
    block_b = max(SUBLANE, _round_up(int(block_b), SUBLANE))
    Bp = _round_up(B, block_b)
    grid = (Bp // block_b,)

    x_p = jnp.zeros((Bp, pdims[0]), jnp.float32).at[:B, :in_dim].set(x)

    # ---- BlockSpecs ----
    in_specs = [pl.BlockSpec((block_b, pdims[0]), lambda i: (i, 0))]
    args = [x_p]
    for wp, bp in zip(w_p, b_p):
        # Full-array blocks with a constant index_map: the pipeline keeps them
        # resident in VMEM and does not re-DMA them per grid step (block index
        # never changes). At <1 MiB total of padded params the default 2-deep
        # buffering footprint is negligible even on v7x's 64 MiB VMEM.
        in_specs.append(pl.BlockSpec(wp.shape, lambda i: (0, 0)))
        in_specs.append(pl.BlockSpec(bp.shape, lambda i: (0, 0)))
        args.append(wp)
        args.append(bp)

    out_spec = pl.BlockSpec((block_b, pdims[-1]), lambda i: (i, 0))  # lane-dense output

    # ---- explicit VMEM budget: 2x-buffered I/O tiles + params + activation scratch ----
    itemsize = 4
    param_bytes = sum(wp.size + bp.size for wp, bp in zip(w_p, b_p)) * itemsize
    io_bytes = block_b * (pdims[0] + pdims[-1]) * itemsize
    act_bytes = block_b * max(pdims) * itemsize * 4
    vmem_limit = int(min(48 * 2 ** 20,
                         max(16 * 2 ** 20, 2 * (2 * param_bytes + 2 * io_bytes + act_bytes))))

    kernel = _make_mlp_kernel(n_layers, compute_dtype, gelu_approximate)

    out_p = pl.pallas_call(
        kernel,
        grid=grid,
        in_specs=in_specs,
        out_specs=out_spec,
        out_shape=jax.ShapeDtypeStruct((Bp, pdims[-1]), jnp.float32),
        compiler_params=pltpu.CompilerParams(
            dimension_semantics=("parallel",),
            vmem_limit_bytes=vmem_limit,
        ),
    )(*args)

    return out_p[:B, :out_dim]


def init_dense_nn_params(key, input_size, output_size, hidden_size_multiplier=2.0 / 3.0,
                         num_layers=5):
    """Deterministic init mirroring torch.nn.Linear's U(-1/sqrt(fan_in), 1/sqrt(fan_in))."""
    hidden = dense_net_size_heuristic(input_size, output_size, hidden_size_multiplier)
    dims = [(input_size, hidden)] + [(hidden, hidden)] * num_layers + [(hidden, output_size)]
    weights, biases = [], []
    for (fan_in, fan_out) in dims:
        key, kw, kb = jax.random.split(key, 3)
        bound = 1.0 / jnp.sqrt(jnp.float32(fan_in))
        w = jax.random.uniform(kw, (fan_in, fan_out), jnp.float32, -bound, bound)
        b = jax.random.uniform(kb, (1, fan_out), jnp.float32, -bound, bound)
        weights.append(w)
        biases.append(b)
    return weights, biases


def _reference_forward(x, weights, biases, approximate=False):
    h = x
    for i, (w, b) in enumerate(zip(weights, biases)):
        h = h @ w + b
        if i < len(weights) - 1:
            h = jax.nn.gelu(h, approximate=approximate)
    return h


if __name__ == "__main__":
    # Shapes consistent with the module: input=32, output=16,
    # hidden = int(2/3 * (32 + 16)) = 32.
    INPUT_SIZE, OUTPUT_SIZE = 32, 16

    key = jax.random.PRNGKey(0)
    key, kx1, kx2 = jax.random.split(key, 3)
    weights, biases = init_dense_nn_params(key, INPUT_SIZE, OUTPUT_SIZE)

    # --- Test 1: exact semantics (f32 MXU, erf GELU), tiny batch -------------
    B1 = 8
    x1 = jax.random.normal(kx1, (B1, INPUT_SIZE), jnp.float32)
    out1 = jax.block_until_ready(dense_nn_forward(x1, weights, biases))
    ref1 = _reference_forward(x1, weights, biases, approximate=False)
    assert out1.shape == (B1, OUTPUT_SIZE)
    assert jnp.allclose(out1, ref1, atol=1e-5, rtol=1e-5), "f32/exact mismatch vs. reference"

    # --- Test 2: fast path (multi-block grid, batch padding, bf16 MXU, tanh GELU) ---
    B2 = 48  # not a multiple of block_b -> exercises row padding; grid=(3,)
    x2 = jax.random.normal(kx2, (B2, INPUT_SIZE), jnp.float32)
    out2 = jax.block_until_ready(
        dense_nn_forward(x2, weights, biases, block_b=16,
                         compute_dtype=jnp.bfloat16, gelu_approximate=True))
    ref2 = _reference_forward(x2, weights, biases, approximate=True)
    assert out2.shape == (B2, OUTPUT_SIZE)
    assert jnp.allclose(out2, ref2, atol=1e-1, rtol=1e-1), "bf16/tanh mismatch vs. reference"

    print("KERNEL_OK")
</pallas_src>

<mosaic_0001>
module attributes {stable_mosaic.version = 11 : i64} {
  func.func @kernel(%arg0: i32, %arg1: memref<8x128xf32, #tpu.memory_space<vmem>>, %arg2: memref<128x128xf32, #tpu.memory_space<vmem>>, %arg3: memref<1x128xf32, #tpu.memory_space<vmem>>, %arg4: memref<128x128xf32, #tpu.memory_space<vmem>>, %arg5: memref<1x128xf32, #tpu.memory_space<vmem>>, %arg6: memref<128x128xf32, #tpu.memory_space<vmem>>, %arg7: memref<1x128xf32, #tpu.memory_space<vmem>>, %arg8: memref<128x128xf32, #tpu.memory_space<vmem>>, %arg9: memref<1x128xf32, #tpu.memory_space<vmem>>, %arg10: memref<128x128xf32, #tpu.memory_space<vmem>>, %arg11: memref<1x128xf32, #tpu.memory_space<vmem>>, %arg12: memref<128x128xf32, #tpu.memory_space<vmem>>, %arg13: memref<1x128xf32, #tpu.memory_space<vmem>>, %arg14: memref<128x128xf32, #tpu.memory_space<vmem>>, %arg15: memref<1x128xf32, #tpu.memory_space<vmem>>, %arg16: memref<8x128xf32, #tpu.memory_space<vmem>>) attributes {dimension_semantics = [#tpu.dimension_semantics<parallel>], iteration_bounds = array<i64: 1>, scalar_prefetch = 0 : i64, scratch_operands = 0 : i64, tpu.core_type = #tpu.core_type<tc>, window_params = [{transform_indices = @transform_0, window_bounds = array<i64: 8, 128>}, {pipeline_mode = #tpu.pipeline_mode<synchronous>, transform_indices = @transform_1, window_bounds = array<i64: 128, 128>}, {pipeline_mode = #tpu.pipeline_mode<synchronous>, transform_indices = @transform_2, window_bounds = array<i64: 1, 128>}, {pipeline_mode = #tpu.pipeline_mode<synchronous>, transform_indices = @transform_3, window_bounds = array<i64: 128, 128>}, {pipeline_mode = #tpu.pipeline_mode<synchronous>, transform_indices = @transform_4, window_bounds = array<i64: 1, 128>}, {pipeline_mode = #tpu.pipeline_mode<synchronous>, transform_indices = @transform_5, window_bounds = array<i64: 128, 128>}, {pipeline_mode = #tpu.pipeline_mode<synchronous>, transform_indices = @transform_6, window_bounds = array<i64: 1, 128>}, {pipeline_mode = #tpu.pipeline_mode<synchronous>, transform_indices = @transform_7, window_bounds = array<i64: 128, 128>}, {pipeline_mode = #tpu.pipeline_mode<synchronous>, transform_indices = @transform_8, window_bounds = array<i64: 1, 128>}, {pipeline_mode = #tpu.pipeline_mode<synchronous>, transform_indices = @transform_9, window_bounds = array<i64: 128, 128>}, {pipeline_mode = #tpu.pipeline_mode<synchronous>, transform_indices = @transform_10, window_bounds = array<i64: 1, 128>}, {pipeline_mode = #tpu.pipeline_mode<synchronous>, transform_indices = @transform_11, window_bounds = array<i64: 128, 128>}, {pipeline_mode = #tpu.pipeline_mode<synchronous>, transform_indices = @transform_12, window_bounds = array<i64: 1, 128>}, {pipeline_mode = #tpu.pipeline_mode<synchronous>, transform_indices = @transform_13, window_bounds = array<i64: 128, 128>}, {pipeline_mode = #tpu.pipeline_mode<synchronous>, transform_indices = @transform_14, window_bounds = array<i64: 1, 128>}, {transform_indices = @transform_15, window_bounds = array<i64: 8, 128>}]} {
    %c0 = arith.constant 0 : index
    %c0_0 = arith.constant 0 : index
    %0 = vector.load %arg1[%c0, %c0_0] : memref<8x128xf32, #tpu.memory_space<vmem>>, vector<8x128xf32>
    %c0_1 = arith.constant 0 : index
    %c0_2 = arith.constant 0 : index
    %1 = vector.load %arg2[%c0_1, %c0_2] : memref<128x128xf32, #tpu.memory_space<vmem>>, vector<128x128xf32>
    %c0_3 = arith.constant 0 : index
    %c0_4 = arith.constant 0 : index
    %2 = vector.load %arg3[%c0_3, %c0_4] : memref<1x128xf32, #tpu.memory_space<vmem>>, vector<1x128xf32>
    %cst = arith.constant dense<0.000000e+00> : vector<8x128xf32>
    %3 = tpu.matmul %0, %1, %cst {dimension_numbers = #tpu.dot_dimension_numbers<[1], [0], [0], [1], [0, 0, 1, 1], [], []>} : vector<8x128xf32>, vector<128x128xf32>, vector<8x128xf32> -> vector<8x128xf32>
    %4 = vector.broadcast %2 : vector<1x128xf32> to vector<8x128xf32>
    %5 = arith.addf %3, %4 : vector<8x128xf32>
    %cst_5 = arith.constant 5.000000e-01 : f32
    %6 = vector.broadcast %cst_5 : f32 to vector<8x128xf32>
    %7 = arith.mulf %6, %5 : vector<8x128xf32>
    %cst_6 = arith.constant 0.707106769 : f32
    %8 = vector.broadcast %cst_6 : f32 to vector<8x128xf32>
    %9 = arith.mulf %5, %8 : vector<8x128xf32>
    %10 = math.erf %9 : vector<8x128xf32>
    %cst_7 = arith.constant 1.000000e+00 : f32
    %11 = vector.broadcast %cst_7 : f32 to vector<8x128xf32>
    %12 = arith.addf %11, %10 : vector<8x128xf32>
    %13 = arith.mulf %7, %12 : vector<8x128xf32>
    %c0_8 = arith.constant 0 : index
    %c0_9 = arith.constant 0 : index
    %14 = vector.load %arg4[%c0_8, %c0_9] : memref<128x128xf32, #tpu.memory_space<vmem>>, vector<128x128xf32>
    %c0_10 = arith.constant 0 : index
    %c0_11 = arith.constant 0 : index
    %15 = vector.load %arg5[%c0_10, %c0_11] : memref<1x128xf32, #tpu.memory_space<vmem>>, vector<1x128xf32>
    %cst_12 = arith.constant dense<0.000000e+00> : vector<8x128xf32>
    %16 = tpu.matmul %13, %14, %cst_12 {dimension_numbers = #tpu.dot_dimension_numbers<[1], [0], [0], [1], [0, 0, 1, 1], [], []>} : vector<8x128xf32>, vector<128x128xf32>, vector<8x128xf32> -> vector<8x128xf32>
    %17 = vector.broadcast %15 : vector<1x128xf32> to vector<8x128xf32>
    %18 = arith.addf %16, %17 : vector<8x128xf32>
    %cst_13 = arith.constant 5.000000e-01 : f32
    %19 = vector.broadcast %cst_13 : f32 to vector<8x128xf32>
    %20 = arith.mulf %19, %18 : vector<8x128xf32>
    %cst_14 = arith.constant 0.707106769 : f32
    %21 = vector.broadcast %cst_14 : f32 to vector<8x128xf32>
    %22 = arith.mulf %18, %21 : vector<8x128xf32>
    %23 = math.erf %22 : vector<8x128xf32>
    %cst_15 = arith.constant 1.000000e+00 : f32
    %24 = vector.broadcast %cst_15 : f32 to vector<8x128xf32>
    %25 = arith.addf %24, %23 : vector<8x128xf32>
    %26 = arith.mulf %20, %25 : vector<8x128xf32>
    %c0_16 = arith.constant 0 : index
    %c0_17 = arith.constant 0 : index
    %27 = vector.load %arg6[%c0_16, %c0_17] : memref<128x128xf32, #tpu.memory_space<vmem>>, vector<128x128xf32>
    %c0_18 = arith.constant 0 : index
    %c0_19 = arith.constant 0 : index
    %28 = vector.load %arg7[%c0_18, %c0_19] : memref<1x128xf32, #tpu.memory_space<vmem>>, vector<1x128xf32>
    %cst_20 = arith.constant dense<0.000000e+00> : vector<8x128xf32>
    %29 = tpu.matmul %26, %27, %cst_20 {dimension_numbers = #tpu.dot_dimension_numbers<[1], [0], [0], [1], [0, 0, 1, 1], [], []>} : vector<8x128xf32>, vector<128x128xf32>, vector<8x128xf32> -> vector<8x128xf32>
    %30 = vector.broadcast %28 : vector<1x128xf32> to vector<8x128xf32>
    %31 = arith.addf %29, %30 : vector<8x128xf32>
    %cst_21 = arith.constant 5.000000e-01 : f32
    %32 = vector.broadcast %cst_21 : f32 to vector<8x128xf32>
    %33 = arith.mulf %32, %31 : vector<8x128xf32>
    %cst_22 = arith.constant 0.707106769 : f32
    %34 = vector.broadcast %cst_22 : f32 to vector<8x128xf32>
    %35 = arith.mulf %31, %34 : vector<8x128xf32>
    %36 = math.erf %35 : vector<8x128xf32>
    %cst_23 = arith.constant 1.000000e+00 : f32
    %37 = vector.broadcast %cst_23 : f32 to vector<8x128xf32>
    %38 = arith.addf %37, %36 : vector<8x128xf32>
    %39 = arith.mulf %33, %38 : vector<8x128xf32>
    %c0_24 = arith.constant 0 : index
    %c0_25 = arith.constant 0 : index
    %40 = vector.load %arg8[%c0_24, %c0_25] : memref<128x128xf32, #tpu.memory_space<vmem>>, vector<128x128xf32>
    %c0_26 = arith.constant 0 : index
    %c0_27 = arith.constant 0 : index
    %41 = vector.load %arg9[%c0_26, %c0_27] : memref<1x128xf32, #tpu.memory_space<vmem>>, vector<1x128xf32>
    %cst_28 = arith.constant dense<0.000000e+00> : vector<8x128xf32>
    %42 = tpu.matmul %39, %40, %cst_28 {dimension_numbers = #tpu.dot_dimension_numbers<[1], [0], [0], [1], [0, 0, 1, 1], [], []>} : vector<8x128xf32>, vector<128x128xf32>, vector<8x128xf32> -> vector<8x128xf32>
    %43 = vector.broadcast %41 : vector<1x128xf32> to vector<8x128xf32>
    %44 = arith.addf %42, %43 : vector<8x128xf32>
    %cst_29 = arith.constant 5.000000e-01 : f32
    %45 = vector.broadcast %cst_29 : f32 to vector<8x128xf32>
    %46 = arith.mulf %45, %44 : vector<8x128xf32>
    %cst_30 = arith.constant 0.707106769 : f32
    %47 = vector.broadcast %cst_30 : f32 to vector<8x128xf32>
    %48 = arith.mulf %44, %47 : vector<8x128xf32>
    %49 = math.erf %48 : vector<8x128xf32>
    %cst_31 = arith.constant 1.000000e+00 : f32
    %50 = vector.broadcast %cst_31 : f32 to vector<8x128xf32>
    %51 = arith.addf %50, %49 : vector<8x128xf32>
    %52 = arith.mulf %46, %51 : vector<8x128xf32>
    %c0_32 = arith.constant 0 : index
    %c0_33 = arith.constant 0 : index
    %53 = vector.load %arg10[%c0_32, %c0_33] : memref<128x128xf32, #tpu.memory_space<vmem>>, vector<128x128xf32>
    %c0_34 = arith.constant 0 : index
    %c0_35 = arith.constant 0 : index
    %54 = vector.load %arg11[%c0_34, %c0_35] : memref<1x128xf32, #tpu.memory_space<vmem>>, vector<1x128xf32>
    %cst_36 = arith.constant dense<0.000000e+00> : vector<8x128xf32>
    %55 = tpu.matmul %52, %53, %cst_36 {dimension_numbers = #tpu.dot_dimension_numbers<[1], [0], [0], [1], [0, 0, 1, 1], [], []>} : vector<8x128xf32>, vector<128x128xf32>, vector<8x128xf32> -> vector<8x128xf32>
    %56 = vector.broadcast %54 : vector<1x128xf32> to vector<8x128xf32>
    %57 = arith.addf %55, %56 : vector<8x128xf32>
    %cst_37 = arith.constant 5.000000e-01 : f32
    %58 = vector.broadcast %cst_37 : f32 to vector<8x128xf32>
    %59 = arith.mulf %58, %57 : vector<8x128xf32>
    %cst_38 = arith.constant 0.707106769 : f32
    %60 = vector.broadcast %cst_38 : f32 to vector<8x128xf32>
    %61 = arith.mulf %57, %60 : vector<8x128xf32>
    %62 = math.erf %61 : vector<8x128xf32>
    %cst_39 = arith.constant 1.000000e+00 : f32
    %63 = vector.broadcast %cst_39 : f32 to vector<8x128xf32>
    %64 = arith.addf %63, %62 : vector<8x128xf32>
    %65 = arith.mulf %59, %64 : vector<8x128xf32>
    %c0_40 = arith.constant 0 : index
    %c0_41 = arith.constant 0 : index
    %66 = vector.load %arg12[%c0_40, %c0_41] : memref<128x128xf32, #tpu.memory_space<vmem>>, vector<128x128xf32>
    %c0_42 = arith.constant 0 : index
    %c0_43 = arith.constant 0 : index
    %67 = vector.load %arg13[%c0_42, %c0_43] : memref<1x128xf32, #tpu.memory_space<vmem>>, vector<1x128xf32>
    %cst_44 = arith.constant dense<0.000000e+00> : vector<8x128xf32>
    %68 = tpu.matmul %65, %66, %cst_44 {dimension_numbers = #tpu.dot_dimension_numbers<[1], [0], [0], [1], [0, 0, 1, 1], [], []>} : vector<8x128xf32>, vector<128x128xf32>, vector<8x128xf32> -> vector<8x128xf32>
    %69 = vector.broadcast %67 : vector<1x128xf32> to vector<8x128xf32>
    %70 = arith.addf %68, %69 : vector<8x128xf32>
    %cst_45 = arith.constant 5.000000e-01 : f32
    %71 = vector.broadcast %cst_45 : f32 to vector<8x128xf32>
    %72 = arith.mulf %71, %70 : vector<8x128xf32>
    %cst_46 = arith.constant 0.707106769 : f32
    %73 = vector.broadcast %cst_46 : f32 to vector<8x128xf32>
    %74 = arith.mulf %70, %73 : vector<8x128xf32>
    %75 = math.erf %74 : vector<8x128xf32>
    %cst_47 = arith.constant 1.000000e+00 : f32
    %76 = vector.broadcast %cst_47 : f32 to vector<8x128xf32>
    %77 = arith.addf %76, %75 : vector<8x128xf32>
    %78 = arith.mulf %72, %77 : vector<8x128xf32>
    %c0_48 = arith.constant 0 : index
    %c0_49 = arith.constant 0 : index
    %79 = vector.load %arg14[%c0_48, %c0_49] : memref<128x128xf32, #tpu.memory_space<vmem>>, vector<128x128xf32>
    %c0_50 = arith.constant 0 : index
    %c0_51 = arith.constant 0 : index
    %80 = vector.load %arg15[%c0_50, %c0_51] : memref<1x128xf32, #tpu.memory_space<vmem>>, vector<1x128xf32>
    %cst_52 = arith.constant dense<0.000000e+00> : vector<8x128xf32>
    %81 = tpu.matmul %78, %79, %cst_52 {dimension_numbers = #tpu.dot_dimension_numbers<[1], [0], [0], [1], [0, 0, 1, 1], [], []>} : vector<8x128xf32>, vector<128x128xf32>, vector<8x128xf32> -> vector<8x128xf32>
    %82 = vector.broadcast %80 : vector<1x128xf32> to vector<8x128xf32>
    %83 = arith.addf %81, %82 : vector<8x128xf32>
    %c0_53 = arith.constant 0 : index
    %c0_54 = arith.constant 0 : index
    %84 = vector.load %arg16[%c0_53, %c0_54] : memref<8x128xf32, #tpu.memory_space<vmem>>, vector<8x128xf32>
    tpu.vector_store %arg16[%c0_53, %c0_54], %83 {strides = array<i32>} : memref<8x128xf32, #tpu.memory_space<vmem>>, vector<8x128xf32>,
    return
  }
  func.func @transform_0(%arg0: i32) -> (i32, i32) {
    %c0_i32 = arith.constant 0 : i32
    %c0_i32_0 = arith.constant 0 : i32
    return %arg0, %c0_i32 : i32, i32
  }
  func.func @transform_1(%arg0: i32) -> (i32, i32) {
    %c0_i32 = arith.constant 0 : i32
    %c0_i32_0 = arith.constant 0 : i32
    %c0_i32_1 = arith.constant 0 : i32
    return %c0_i32, %c0_i32_0 : i32, i32
  }
  func.func @transform_2(%arg0: i32) -> (i32, i32) {
    %c0_i32 = arith.constant 0 : i32
    %c0_i32_0 = arith.constant 0 : i32
    %c0_i32_1 = arith.constant 0 : i32
    return %c0_i32, %c0_i32_0 : i32, i32
  }
  func.func @transform_3(%arg0: i32) -> (i32, i32) {
    %c0_i32 = arith.constant 0 : i32
    %c0_i32_0 = arith.constant 0 : i32
    %c0_i32_1 = arith.constant 0 : i32
    return %c0_i32, %c0_i32_0 : i32, i32
  }
  func.func @transform_4(%arg0: i32) -> (i32, i32) {
    %c0_i32 = arith.constant 0 : i32
    %c0_i32_0 = arith.constant 0 : i32
    %c0_i32_1 = arith.constant 0 : i32
    return %c0_i32, %c0_i32_0 : i32, i32
  }
  func.func @transform_5(%arg0: i32) -> (i32, i32) {
    %c0_i32 = arith.constant 0 : i32
    %c0_i32_0 = arith.constant 0 : i32
    %c0_i32_1 = arith.constant 0 : i32
    return %c0_i32, %c0_i32_0 : i32, i32
  }
  func.func @transform_6(%arg0: i32) -> (i32, i32) {
    %c0_i32 = arith.constant 0 : i32
    %c0_i32_0 = arith.constant 0 : i32
    %c0_i32_1 = arith.constant 0 : i32
    return %c0_i32, %c0_i32_0 : i32, i32
  }
  func.func @transform_7(%arg0: i32) -> (i32, i32) {
    %c0_i32 = arith.constant 0 : i32
    %c0_i32_0 = arith.constant 0 : i32
    %c0_i32_1 = arith.constant 0 : i32
    return %c0_i32, %c0_i32_0 : i32, i32
  }
  func.func @transform_8(%arg0: i32) -> (i32, i32) {
    %c0_i32 = arith.constant 0 : i32
    %c0_i32_0 = arith.constant 0 : i32
    %c0_i32_1 = arith.constant 0 : i32
    return %c0_i32, %c0_i32_0 : i32, i32
  }
  func.func @transform_9(%arg0: i32) -> (i32, i32) {
    %c0_i32 = arith.constant 0 : i32
    %c0_i32_0 = arith.constant 0 : i32
    %c0_i32_1 = arith.constant 0 : i32
    return %c0_i32, %c0_i32_0 : i32, i32
  }
  func.func @transform_10(%arg0: i32) -> (i32, i32) {
    %c0_i32 = arith.constant 0 : i32
    %c0_i32_0 = arith.constant 0 : i32
    %c0_i32_1 = arith.constant 0 : i32
    return %c0_i32, %c0_i32_0 : i32, i32
  }
  func.func @transform_11(%arg0: i32) -> (i32, i32) {
    %c0_i32 = arith.constant 0 : i32
    %c0_i32_0 = arith.constant 0 : i32
    %c0_i32_1 = arith.constant 0 : i32
    return %c0_i32, %c0_i32_0 : i32, i32
  }
  func.func @transform_12(%arg0: i32) -> (i32, i32) {
    %c0_i32 = arith.constant 0 : i32
    %c0_i32_0 = arith.constant 0 : i32
    %c0_i32_1 = arith.constant 0 : i32
    return %c0_i32, %c0_i32_0 : i32, i32
  }
  func.func @transform_13(%arg0: i32) -> (i32, i32) {
    %c0_i32 = arith.constant 0 : i32
    %c0_i32_0 = arith.constant 0 : i32
    %c0_i32_1 = arith.constant 0 : i32
    return %c0_i32, %c0_i32_0 : i32, i32
  }
  func.func @transform_14(%arg0: i32) -> (i32, i32) {
    %c0_i32 = arith.constant 0 : i32
    %c0_i32_0 = arith.constant 0 : i32
    %c0_i32_1 = arith.constant 0 : i32
    return %c0_i32, %c0_i32_0 : i32, i32
  }
  func.func @transform_15(%arg0: i32) -> (i32, i32) {
    %c0_i32 = arith.constant 0 : i32
    %c0_i32_0 = arith.constant 0 : i32
    return %arg0, %c0_i32 : i32, i32
  }
}

</mosaic_0001>

<llo_original>
// kernel: tpu_custom_call.1
$region0: #{tpu_custom_call.1}
  #allocation0 [shape = 'u32[]', space=smem, size = 0x4, offset = 0x4, fixed_abs, tag = 'smem constant byte address 0x4 - core index']
  #allocation1 [shape = 'u32[144,128]{1,0:T(1,128)}', space=vmem, size = 0x12000, scoped, tag = 'internal scratch']
  %s0 = inlined_call_operand.hbm [shape: f32[8,128], index: 0, kind: input, shape index: {}]
  %s1 = inlined_call_operand.hbm [shape: f32[128,128], index: 1, kind: input, shape index: {}]
  %s2 = inlined_call_operand.vmem [shape: f32[1,128], index: 2, kind: input, shape index: {}]
  %s3 = inlined_call_operand.hbm [shape: f32[128,128], index: 3, kind: input, shape index: {}]
  %s4 = inlined_call_operand.vmem [shape: f32[1,128], index: 4, kind: input, shape index: {}]
  %s5 = inlined_call_operand.hbm [shape: f32[128,128], index: 5, kind: input, shape index: {}]
  %s6 = inlined_call_operand.vmem [shape: f32[1,128], index: 6, kind: input, shape index: {}]
  %s7 = inlined_call_operand.hbm [shape: f32[128,128], index: 7, kind: input, shape index: {}]
  %s8 = inlined_call_operand.vmem [shape: f32[1,128], index: 8, kind: input, shape index: {}]
  %s9 = inlined_call_operand.hbm [shape: f32[128,128], index: 9, kind: input, shape index: {}]
  %s10 = inlined_call_operand.vmem [shape: f32[1,128], index: 10, kind: input, shape index: {}]
  %s11 = inlined_call_operand.hbm [shape: f32[128,128], index: 11, kind: input, shape index: {}]
  %s12 = inlined_call_operand.vmem [shape: f32[1,128], index: 12, kind: input, shape index: {}]
  %s13 = inlined_call_operand.hbm [shape: f32[128,128], index: 13, kind: input, shape index: {}]
  %s14 = inlined_call_operand.vmem [shape: f32[1,128], index: 14, kind: input, shape index: {}]
  %s15 = inlined_call_operand.hbm [shape: f32[8,128], index: 15, kind: output, shape index: {}]
  %s16 = sld [smem:[#allocation0]]
  $region102: #{tpu_custom_call.1} parent=0
    _
  %s18 = ssub.s32 1, %s16
  %s19 = scalar_select 0, %s18, %s16
  $region1: #{tpu_custom_call.1} parent=0
    #allocation2 [shape = 'u8[4096]{0}', space=vmem, size = 0x1000, scoped, tag = 'input window, operand 0, single buffered']
    #allocation3 [shape = 's32[1]{0}', space=sflag, size = 0x4, scoped, tag = 'scoped memory for tpu_custom_call.1']
    #allocation4 [shape = 's32[1]{0}', space=sflag, size = 0x4, scoped, tag = 'scoped memory for tpu_custom_call.1']
    #allocation5 [shape = 'u8[65536]{0}', space=vmem, size = 0x10000, scoped, tag = 'input window, operand 1, single buffered']
    #allocation6 [shape = 's32[1]{0}', space=sflag, size = 0x4, scoped, tag = 'scoped memory for tpu_custom_call.1']
    #allocation7 [shape = 'u8[65536]{0}', space=vmem, size = 0x10000, scoped, tag = 'input window, operand 3, single buffered']
    #allocation8 [shape = 'u8[65536]{0}', space=vmem, size = 0x10000, scoped, tag = 'input window, operand 5, single buffered']
    #allocation9 [shape = 's32[1]{0}', space=sflag, size = 0x4, scoped, tag = 'scoped memory for tpu_custom_call.1']
    #allocation10 [shape = 'u8[65536]{0}', space=vmem, size = 0x10000, scoped, tag = 'input window, operand 7, single buffered']
    #allocation11 [shape = 'u8[65536]{0}', space=vmem, size = 0x10000, scoped, tag = 'input window, operand 9, single buffered']
    #allocation12 [shape = 's32[1]{0}', space=sflag, size = 0x4, scoped, tag = 'scoped memory for tpu_custom_call.1']
    #allocation13 [shape = 'u8[65536]{0}', space=vmem, size = 0x10000, scoped, tag = 'input window, operand 11, single buffered']
    #allocation14 [shape = 'u8[65536]{0}', space=vmem, size = 0x10000, scoped, tag = 'input window, operand 13, single buffered']
    #allocation15 [shape = 's32[1]{0}', space=sflag, size = 0x4, scoped, tag = 'scoped memory for tpu_custom_call.1']
    #allocation16 [shape = 'u8[4096]{0}', space=vmem, size = 0x1000, scoped, tag = 'output window, operand 0, single buffered']
    %20 = vsyncpa [#allocation3], 0
    %21 = vsyncpa [#allocation6], 0
    %22 = vsyncpa [#allocation9], 0
    %23 = vsyncpa [#allocation12], 0
    %24 = vsyncpa [#allocation15], 0
    %25 = vsyncpa [#allocation4], 0
    // Predicated region
    $region2: #{tpu_custom_call.1} parent=1 // pred_check
      _
    $region3: #{tpu_custom_call.1} parent=1 // pred_check_branch
      %27 = sbr.rel (0) target = $region5
    $region4: #{tpu_custom_call.1} parent=1 // pred_region
      %s29 = ssub.s32 128, 128
      %30 = vsyncadd [#allocation3], %s29
      %s32 = sshll.u32 [#allocation2], 4
      %s33 = int_to_ptr.vmem [resolvable:$true] %s32
      %35 = dma.hbm_to_vmem [thread:$0]  %s0, 128, %s33, [#allocation3]
    $region5: #{tpu_custom_call.1} parent=1 // pred_fallthru
      _
    // Predicated region
    $region6: #{tpu_custom_call.1} parent=1 // pred_check
      _
    $region7: #{tpu_custom_call.1} parent=1 // pred_check_branch
      %37 = sbr.rel (0) target = $region9
    $region8: #{tpu_custom_call.1} parent=1 // pred_region
      %s39 = ssub.s32 2048, 2048
      %40 = vsyncadd [#allocation6], %s39
      %s41 = sshll.u32 [#allocation5], 4
      %s42 = int_to_ptr.vmem [resolvable:$true] %s41
      %47 = dma.hbm_to_vmem [thread:$0]  %s1, 2048, %s42, [#allocation6], 128, 128, 8
    $region9: #{tpu_custom_call.1} parent=1 // pred_fallthru
      _
    // Predicated region
    $region10: #{tpu_custom_call.1} parent=1 // pred_check
      _
    $region11: #{tpu_custom_call.1} parent=1 // pred_check_branch
      %49 = sbr.rel (0) target = $region13
    $region12: #{tpu_custom_call.1} parent=1 // pred_region
      _
    $region13: #{tpu_custom_call.1} parent=1 // pred_fallthru
      _
    // Predicated region
    $region14: #{tpu_custom_call.1} parent=1 // pred_check
      _
    $region15: #{tpu_custom_call.1} parent=1 // pred_check_branch
      %51 = sbr.rel (0) target = $region17
    $region16: #{tpu_custom_call.1} parent=1 // pred_region
      %s53 = ssub.s32 2048, 2048
      %54 = vsyncadd [#allocation6], %s53
      %s55 = sshll.u32 [#allocation7], 4
      %s56 = int_to_ptr.vmem [resolvable:$true] %s55
      %61 = dma.hbm_to_vmem [thread:$0]  %s3, 2048, %s56, [#allocation6], 128, 128, 8
    $region17: #{tpu_custom_call.1} parent=1 // pred_fallthru
      _
    // Predicated region
    $region18: #{tpu_custom_call.1} parent=1 // pred_check
      _
    $region19: #{tpu_custom_call.1} parent=1 // pred_check_branch
      %63 = sbr.rel (0) target = $region21
    $region20: #{tpu_custom_call.1} parent=1 // pred_region
      _
    $region21: #{tpu_custom_call.1} parent=1 // pred_fallthru
      _
    // Predicated region
    $region22: #{tpu_custom_call.1} parent=1 // pred_check
      _
    $region23: #{tpu_custom_call.1} parent=1 // pred_check_branch
      %65 = sbr.rel (0) target = $region25
    $region24: #{tpu_custom_call.1} parent=1 // pred_region
      %s67 = ssub.s32 2048, 2048
      %68 = vsyncadd [#allocation9], %s67
      %s69 = sshll.u32 [#allocation8], 4
      %s70 = int_to_ptr.vmem [resolvable:$true] %s69
      %75 = dma.hbm_to_vmem [thread:$0]  %s5, 2048, %s70, [#allocation9], 128, 128, 8
    $region25: #{tpu_custom_call.1} parent=1 // pred_fallthru
      _
    // Predicated region
    $region26: #{tpu_custom_call.1} parent=1 // pred_check
      _
    $region27: #{tpu_custom_call.1} parent=1 // pred_check_branch
      %77 = sbr.rel (0) target = $region29
    $region28: #{tpu_custom_call.1} parent=1 // pred_region
      _
    $region29: #{tpu_custom_call.1} parent=1 // pred_fallthru
      _
    // Predicated region
    $region30: #{tpu_custom_call.1} parent=1 // pred_check
      _
    $region31: #{tpu_custom_call.1} parent=1 // pred_check_branch
      %79 = sbr.rel (0) target = $region33
    $region32: #{tpu_custom_call.1} parent=1 // pred_region
      %s81 = ssub.s32 2048, 2048
      %82 = vsyncadd [#allocation9], %s81
      %s83 = sshll.u32 [#allocation10], 4
      %s84 = int_to_ptr.vmem [resolvable:$true] %s83
      %89 = dma.hbm_to_vmem [thread:$0]  %s7, 2048, %s84, [#allocation9], 128, 128, 8
    $region33: #{tpu_custom_call.1} parent=1 // pred_fallthru
      _
    // Predicated region
    $region34: #{tpu_custom_call.1} parent=1 // pred_check
      _
    $region35: #{tpu_custom_call.1} parent=1 // pred_check_branch
      %91 = sbr.rel (0) target = $region37
    $region36: #{tpu_custom_call.1} parent=1 // pred_region
      _
    $region37: #{tpu_custom_call.1} parent=1 // pred_fallthru
      _
    // Predicated region
    $region38: #{tpu_custom_call.1} parent=1 // pred_check
      _
    $region39: #{tpu_custom_call.1} parent=1 // pred_check_branch
      %93 = sbr.rel (0) target = $region41
    $region40: #{tpu_custom_call.1} parent=1 // pred_region
      %s95 = ssub.s32 2048, 2048
      %96 = vsyncadd [#allocation12], %s95
      %s97 = sshll.u32 [#allocation11], 4
      %s98 = int_to_ptr.vmem [resolvable:$true] %s97
      %103 = dma.hbm_to_vmem [thread:$0]  %s9, 2048, %s98, [#allocation12], 128, 128, 8
    $region41: #{tpu_custom_call.1} parent=1 // pred_fallthru
      _
    // Predicated region
    $region42: #{tpu_custom_call.1} parent=1 // pred_check
      _
    $region43: #{tpu_custom_call.1} parent=1 // pred_check_branch
      %105 = sbr.rel (0) target = $region45
    $region44: #{tpu_custom_call.1} parent=1 // pred_region
      _
    $region45: #{tpu_custom_call.1} parent=1 // pred_fallthru
      _
    // Predicated region
    $region46: #{tpu_custom_call.1} parent=1 // pred_check
      _
    $region47: #{tpu_custom_call.1} parent=1 // pred_check_branch
      %107 = sbr.rel (0) target = $region49
    $region48: #{tpu_custom_call.1} parent=1 // pred_region
      %s109 = ssub.s32 2048, 2048
      %110 = vsyncadd [#allocation12], %s109
      %s111 = sshll.u32 [#allocation13], 4
      %s112 = int_to_ptr.vmem [resolvable:$true] %s111
      %117 = dma.hbm_to_vmem [thread:$0]  %s11, 2048, %s112, [#allocation12], 128, 128, 8
    $region49: #{tpu_custom_call.1} parent=1 // pred_fallthru
      _
    // Predicated region
    $region50: #{tpu_custom_call.1} parent=1 // pred_check
      _
    $region51: #{tpu_custom_call.1} parent=1 // pred_check_branch
      %119 = sbr.rel (0) target = $region53
    $region52: #{tpu_custom_call.1} parent=1 // pred_region
      _
    $region53: #{tpu_custom_call.1} parent=1 // pred_fallthru
      _
    // Predicated region
    $region54: #{tpu_custom_call.1} parent=1 // pred_check
      _
    $region55: #{tpu_custom_call.1} parent=1 // pred_check_branch
      %121 = sbr.rel (0) target = $region57
    $region56: #{tpu_custom_call.1} parent=1 // pred_region
      %s123 = ssub.s32 2048, 2048
      %124 = vsyncadd [#allocation15], %s123
      %s125 = sshll.u32 [#allocation14], 4
      %s126 = int_to_ptr.vmem [resolvable:$true] %s125
      %131 = dma.hbm_to_vmem [thread:$0]  %s13, 2048, %s126, [#allocation15], 128, 128, 8
    $region57: #{tpu_custom_call.1} parent=1 // pred_fallthru
      _
    // Predicated region
    $region58: #{tpu_custom_call.1} parent=1 // pred_check
      _
    $region59: #{tpu_custom_call.1} parent=1 // pred_check_branch
      %133 = sbr.rel (0) target = $region61
    $region60: #{tpu_custom_call.1} parent=1 // pred_region
      _
    $region61: #{tpu_custom_call.1} parent=1 // pred_fallthru
      _
    // Predicated region
    $region62: #{tpu_custom_call.1} parent=1 // pred_check
      _
    $region63: #{tpu_custom_call.1} parent=1 // pred_check_branch
      %135 = sbr.rel (0) target = $region65
    $region64: #{tpu_custom_call.1} parent=1 // pred_region
      %136 = dma.done [#allocation3], 128
    $region65: #{tpu_custom_call.1} parent=1 // pred_fallthru
      _
    // Predicated region
    $region66: #{tpu_custom_call.1} parent=1 // pred_check
      _
    $region67: #{tpu_custom_call.1} parent=1 // pred_check_branch
      %138 = sbr.rel (0) target = $region69
    $region68: #{tpu_custom_call.1} parent=1 // pred_region
      %139 = dma.done [#allocation6], 2048
    $region69: #{tpu_custom_call.1} parent=1 // pred_fallthru
      _
    // Predicated region
    $region70: #{tpu_custom_call.1} parent=1 // pred_check
      _
    $region71: #{tpu_custom_call.1} parent=1 // pred_check_branch
      %141 = sbr.rel (0) target = $region73
    $region72: #{tpu_custom_call.1} parent=1 // pred_region
      %142 = dma.done [#allocation6], 2048
    $region73: #{tpu_custom_call.1} parent=1 // pred_fallthru
      _
    // Predicated region
    $region74: #{tpu_custom_call.1} parent=1 // pred_check
      _
    $region75: #{tpu_custom_call.1} parent=1 // pred_check_branch
      %144 = sbr.rel (0) target = $region77
    $region76: #{tpu_custom_call.1} parent=1 // pred_region
      %145 = dma.done [#allocation9], 2048
    $region77: #{tpu_custom_call.1} parent=1 // pred_fallthru
      _
    // Predicated region
    $region78: #{tpu_custom_call.1} parent=1 // pred_check
      _
    $region79: #{tpu_custom_call.1} parent=1 // pred_check_branch
      %147 = sbr.rel (0) target = $region81
    $region80: #{tpu_custom_call.1} parent=1 // pred_region
      %148 = dma.done [#allocation9], 2048
    $region81: #{tpu_custom_call.1} parent=1 // pred_fallthru
      _
    // Predicated region
    $region82: #{tpu_custom_call.1} parent=1 // pred_check
      _
    $region83: #{tpu_custom_call.1} parent=1 // pred_check_branch
      %150 = sbr.rel (0) target = $region85
    $region84: #{tpu_custom_call.1} parent=1 // pred_region
      %151 = dma.done [#allocation12], 2048
    $region85: #{tpu_custom_call.1} parent=1 // pred_fallthru
      _
    // Predicated region
    $region86: #{tpu_custom_call.1} parent=1 // pred_check
      _
    $region87: #{tpu_custom_call.1} parent=1 // pred_check_branch
      %153 = sbr.rel (0) target = $region89
    $region88: #{tpu_custom_call.1} parent=1 // pred_region
      %154 = dma.done [#allocation12], 2048
    $region89: #{tpu_custom_call.1} parent=1 // pred_fallthru
      _
    // Predicated region
    $region90: #{tpu_custom_call.1} parent=1 // pred_check
      _
    $region91: #{tpu_custom_call.1} parent=1 // pred_check_branch
      %156 = sbr.rel (0) target = $region93
    $region92: #{tpu_custom_call.1} parent=1 // pred_region
      %157 = dma.done [#allocation15], 2048
    $region93: #{tpu_custom_call.1} parent=1 // pred_fallthru
      _
    %v158 = vld [vmem:[#allocation2] sm:$0xff]
    %v159 = vld [vmem:[#allocation5] sm:$0xff]
    %v160 = vld [vmem:[#allocation5 + $0x8] sm:$0xff]
    %v161 = vld [vmem:[#allocation5 + $0x10] sm:$0xff]
    %v162 = vld [vmem:[#allocation5 + $0x18] sm:$0xff]
    %v163 = vld [vmem:[#allocation5 + $0x20] sm:$0xff]
    %v164 = vld [vmem:[#allocation5 + $0x28] sm:$0xff]
    %v165 = vld [vmem:[#allocation5 + $0x30] sm:$0xff]
    %v166 = vld [vmem:[#allocation5 + $0x38] sm:$0xff]
    %v167 = vld [vmem:[#allocation5 + $0x40] sm:$0xff]
    %v168 = vld [vmem:[#allocation5 + $0x48] sm:$0xff]
    %v169 = vld [vmem:[#allocation5 + $0x50] sm:$0xff]
    %v170 = vld [vmem:[#allocation5 + $0x58] sm:$0xff]
    %v171 = vld [vmem:[#allocation5 + $0x60] sm:$0xff]
    %v172 = vld [vmem:[#allocation5 + $0x68] sm:$0xff]
    %v173 = vld [vmem:[#allocation5 + $0x70] sm:$0xff]
    %v174 = vld [vmem:[#allocation5 + $0x78] sm:$0xff]
    %v175 = vld [vmem:[%s2] sm:$0x1]
    %v177 = vlaneseq
    %v178 = vshrl.u32 %v177, 7
    %v179 = vsub.s32 0, %v178
    %v180 = vrot.slane %v175, %v179
    %182 = vmatprep.subr.mxu0 0.0
    %183 = vmatpush1.msra.mxu0 %v174
    %184 = vmatprep.subr.mxu0 0.0
    %185 = vmatpush1.msra.mxu0 %v173
    %186 = vmatprep.subr.mxu0 0.0
    %187 = vmatpush1.msra.mxu0 %v172
    %188 = vmatprep.subr.mxu0 0.0
    %189 = vmatpush1.msra.mxu0 %v171
    %190 = vmatprep.subr.mxu0 0.0
    %191 = vmatpush1.msra.mxu0 %v170
    %192 = vmatprep.subr.mxu0 0.0
    %193 = vmatpush1.msra.mxu0 %v169
    %194 = vmatprep.subr.mxu0 0.0
    %195 = vmatpush1.msra.mxu0 %v168
    %196 = vmatprep.subr.mxu0 0.0
    %197 = vmatpush1.msra.mxu0 %v167
    %198 = vmatprep.subr.mxu0 0.0
    %199 = vmatpush1.msra.mxu0 %v166
    %200 = vmatprep.subr.mxu0 0.0
    %201 = vmatpush1.msra.mxu0 %v165
    %202 = vmatprep.subr.mxu0 0.0
    %203 = vmatpush1.msra.mxu0 %v164
    %204 = vmatprep.subr.mxu0 0.0
    %205 = vmatpush1.msra.mxu0 %v163
    %206 = vmatprep.subr.mxu0 0.0
    %207 = vmatpush1.msra.mxu0 %v162
    %208 = vmatprep.subr.mxu0 0.0
    %209 = vmatpush1.msra.mxu0 %v161
    %210 = vmatprep.subr.mxu0 0.0
    %211 = vmatpush1.msra.mxu0 %v160
    %212 = vmatprep.subr.mxu0 0.0
    %213 = vmatpush1.msra.mxu0 %v159
    %214 = vmatprep.subr.mxu0 0.0
    %215 = vmatpush2.msra.mxu0 0.0
    %216 = vmatprep.subr.mxu0 0.0
    %217 = vmatpush2.msra.mxu0 0.0
    %218 = vmatprep.subr.mxu0 0.0
    %219 = vmatpush2.msra.mxu0 0.0
    %220 = vmatprep.subr.mxu0 0.0
    %221 = vmatpush2.msra.mxu0 0.0
    %222 = vmatprep.subr.mxu0 0.0
    %223 = vmatpush2.msra.mxu0 0.0
    %224 = vmatprep.subr.mxu0 0.0
    %225 = vmatpush2.msra.mxu0 0.0
    %226 = vmatprep.subr.mxu0 0.0
    %227 = vmatpush2.msra.mxu0 0.0
    %228 = vmatprep.subr.mxu0 0.0
    %229 = vmatpush2.msra.mxu0 0.0
    %230 = vmatprep.subr.mxu0 0.0
    %231 = vmatpush2.msra.mxu0 0.0
    %232 = vmatprep.subr.mxu0 0.0
    %233 = vmatpush2.msra.mxu0 0.0
    %234 = vmatprep.subr.mxu0 0.0
    %235 = vmatpush2.msra.mxu0 0.0
    %236 = vmatprep.subr.mxu0 0.0
    %237 = vmatpush2.msra.mxu0 0.0
    %238 = vmatprep.subr.mxu0 0.0
    %239 = vmatpush2.msra.mxu0 0.0
    %240 = vmatprep.subr.mxu0 0.0
    %241 = vmatpush2.msra.mxu0 0.0
    %242 = vmatprep.subr.mxu0 0.0
    %243 = vmatpush2.msra.mxu0 0.0
    %244 = vmatprep.subr.mxu0 0.0
    %245 = vmatpush2.msra.mxu0 0.0
    %246 = vmatprep.mubr.f32.mxu0 0.0
    %247 = vmatmul.mubr.f32.gmra.mxu0 %v158
    %v248 = vpop.f32.mrf.mxu0
    %v249 = vadd.f32 %v180, %v248
    %v250 = vpop.f32.mrf.mxu0
    %251 = vdwg.mxu0
    %v252 = vmul.f32 %v249, 0.5
    %v253 = vmul.f32 %v249, 0.70710677
    %v254 = verf.f32.pop %v253
    %v255 = vadd.f32 %v254, 1.0
    %v256 = vmul.f32 %v252, %v255
    %v257 = vld [vmem:[#allocation7] sm:$0xff]
    %v258 = vld [vmem:[#allocation7 + $0x8] sm:$0xff]
    %v259 = vld [vmem:[#allocation7 + $0x10] sm:$0xff]
    %v260 = vld [vmem:[#allocation7 + $0x18] sm:$0xff]
    %v261 = vld [vmem:[#allocation7 + $0x20] sm:$0xff]
    %v262 = vld [vmem:[#allocation7 + $0x28] sm:$0xff]
    %v263 = vld [vmem:[#allocation7 + $0x30] sm:$0xff]
    %v264 = vld [vmem:[#allocation7 + $0x38] sm:$0xff]
    %v265 = vld [vmem:[#allocation7 + $0x40] sm:$0xff]
    %v266 = vld [vmem:[#allocation7 + $0x48] sm:$0xff]
    %v267 = vld [vmem:[#allocation7 + $0x50] sm:$0xff]
    %v268 = vld [vmem:[#allocation7 + $0x58] sm:$0xff]
    %v269 = vld [vmem:[#allocation7 + $0x60] sm:$0xff]
    %v270 = vld [vmem:[#allocation7 + $0x68] sm:$0xff]
    %v271 = vld [vmem:[#allocation7 + $0x70] sm:$0xff]
    %v272 = vld [vmem:[#allocation7 + $0x78] sm:$0xff]
    %v273 = vld [vmem:[%s4] sm:$0x1]
    %v275 = vlaneseq
    %v276 = vshrl.u32 %v275, 7
    %v277 = vsub.s32 0, %v276
    %v278 = vrot.slane %v273, %v277
    %280 = vmatprep.subr.mxu0 0.0
    %281 = vmatpush1.msra.mxu0 %v272
    %282 = vmatprep.subr.mxu0 0.0
    %283 = vmatpush1.msra.mxu0 %v271
    %284 = vmatprep.subr.mxu0 0.0
    %285 = vmatpush1.msra.mxu0 %v270
    %286 = vmatprep.subr.mxu0 0.0
    %287 = vmatpush1.msra.mxu0 %v269
    %288 = vmatprep.subr.mxu0 0.0
    %289 = vmatpush1.msra.mxu0 %v268
    %290 = vmatprep.subr.mxu0 0.0
    %291 = vmatpush1.msra.mxu0 %v267
    %292 = vmatprep.subr.mxu0 0.0
    %293 = vmatpush1.msra.mxu0 %v266
    %294 = vmatprep.subr.mxu0 0.0
    %295 = vmatpush1.msra.mxu0 %v265
    %296 = vmatprep.subr.mxu0 0.0
    %297 = vmatpush1.msra.mxu0 %v264
    %298 = vmatprep.subr.mxu0 0.0
    %299 = vmatpush1.msra.mxu0 %v263
    %300 = vmatprep.subr.mxu0 0.0
    %301 = vmatpush1.msra.mxu0 %v262
    %302 = vmatprep.subr.mxu0 0.0
    %303 = vmatpush1.msra.mxu0 %v261
    %304 = vmatprep.subr.mxu0 0.0
    %305 = vmatpush1.msra.mxu0 %v260
    %306 = vmatprep.subr.mxu0 0.0
    %307 = vmatpush1.msra.mxu0 %v259
    %308 = vmatprep.subr.mxu0 0.0
    %309 = vmatpush1.msra.mxu0 %v258
    %310 = vmatprep.subr.mxu0 0.0
    %311 = vmatpush1.msra.mxu0 %v257
    %312 = vmatprep.subr.mxu0 0.0
    %313 = vmatpush2.msra.mxu0 0.0
    %314 = vmatprep.subr.mxu0 0.0
    %315 = vmatpush2.msra.mxu0 0.0
    %316 = vmatprep.subr.mxu0 0.0
    %317 = vmatpush2.msra.mxu0 0.0
    %318 = vmatprep.subr.mxu0 0.0
    %319 = vmatpush2.msra.mxu0 0.0
    %320 = vmatprep.subr.mxu0 0.0
    %321 = vmatpush2.msra.mxu0 0.0
    %322 = vmatprep.subr.mxu0 0.0
    %323 = vmatpush2.msra.mxu0 0.0
    %324 = vmatprep.subr.mxu0 0.0
    %325 = vmatpush2.msra.mxu0 0.0
    %326 = vmatprep.subr.mxu0 0.0
    %327 = vmatpush2.msra.mxu0 0.0
    %328 = vmatprep.subr.mxu0 0.0
    %329 = vmatpush2.msra.mxu0 0.0
    %330 = vmatprep.subr.mxu0 0.0
    %331 = vmatpush2.msra.mxu0 0.0
    %332 = vmatprep.subr.mxu0 0.0
    %333 = vmatpush2.msra.mxu0 0.0
    %334 = vmatprep.subr.mxu0 0.0
    %335 = vmatpush2.msra.mxu0 0.0
    %336 = vmatprep.subr.mxu0 0.0
    %337 = vmatpush2.msra.mxu0 0.0
    %338 = vmatprep.subr.mxu0 0.0
    %339 = vmatpush2.msra.mxu0 0.0
    %340 = vmatprep.subr.mxu0 0.0
    %341 = vmatpush2.msra.mxu0 0.0
    %342 = vmatprep.subr.mxu0 0.0
    %343 = vmatpush2.msra.mxu0 0.0
    %344 = vmatprep.mubr.f32.mxu0 0.0
    %345 = vmatmul.mubr.f32.gmra.mxu0 %v256
    %v346 = vpop.f32.mrf.mxu0
    %v347 = vadd.f32 %v278, %v346
    %v348 = vpop.f32.mrf.mxu0
    %349 = vdwg.mxu0
    %v350 = vmul.f32 %v347, 0.5
    %v351 = vmul.f32 %v347, 0.70710677
    %v352 = verf.f32.pop %v351
    %v353 = vadd.f32 %v352, 1.0
    %v354 = vmul.f32 %v350, %v353
    %v355 = vld [vmem:[#allocation8] sm:$0xff]
    %v356 = vld [vmem:[#allocation8 + $0x8] sm:$0xff]
    %v357 = vld [vmem:[#allocation8 + $0x10] sm:$0xff]
    %v358 = vld [vmem:[#allocation8 + $0x18] sm:$0xff]
    %v359 = vld [vmem:[#allocation8 + $0x20] sm:$0xff]
    %v360 = vld [vmem:[#allocation8 + $0x28] sm:$0xff]
    %v361 = vld [vmem:[#allocation8 + $0x30] sm:$0xff]
    %v362 = vld [vmem:[#allocation8 + $0x38] sm:$0xff]
    %v363 = vld [vmem:[#allocation8 + $0x40] sm:$0xff]
    %v364 = vld [vmem:[#allocation8 + $0x48] sm:$0xff]
    %v365 = vld [vmem:[#allocation8 + $0x50] sm:$0xff]
    %v366 = vld [vmem:[#allocation8 + $0x58] sm:$0xff]
    %v367 = vld [vmem:[#allocation8 + $0x60] sm:$0xff]
    %v368 = vld [vmem:[#allocation8 + $0x68] sm:$0xff]
    %v369 = vld [vmem:[#allocation8 + $0x70] sm:$0xff]
    %v370 = vld [vmem:[#allocation8 + $0x78] sm:$0xff]
    %v371 = vld [vmem:[%s6] sm:$0x1]
    %v373 = vlaneseq
    %v374 = vshrl.u32 %v373, 7
    %v375 = vsub.s32 0, %v374
    %v376 = vrot.slane %v371, %v375
    %378 = vmatprep.subr.mxu0 0.0
    %379 = vmatpush1.msra.mxu0 %v370
    %380 = vmatprep.subr.mxu0 0.0
    %381 = vmatpush1.msra.mxu0 %v369
    %382 = vmatprep.subr.mxu0 0.0
    %383 = vmatpush1.msra.mxu0 %v368
    %384 = vmatprep.subr.mxu0 0.0
    %385 = vmatpush1.msra.mxu0 %v367
    %386 = vmatprep.subr.mxu0 0.0
    %387 = vmatpush1.msra.mxu0 %v366
    %388 = vmatprep.subr.mxu0 0.0
    %389 = vmatpush1.msra.mxu0 %v365
    %390 = vmatprep.subr.mxu0 0.0
    %391 = vmatpush1.msra.mxu0 %v364
    %392 = vmatprep.subr.mxu0 0.0
    %393 = vmatpush1.msra.mxu0 %v363
    %394 = vmatprep.subr.mxu0 0.0
    %395 = vmatpush1.msra.mxu0 %v362
    %396 = vmatprep.subr.mxu0 0.0
    %397 = vmatpush1.msra.mxu0 %v361
    %398 = vmatprep.subr.mxu0 0.0
    %399 = vmatpush1.msra.mxu0 %v360
    %400 = vmatprep.subr.mxu0 0.0
    %401 = vmatpush1.msra.mxu0 %v359
    %402 = vmatprep.subr.mxu0 0.0
    %403 = vmatpush1.msra.mxu0 %v358
    %404 = vmatprep.subr.mxu0 0.0
    %405 = vmatpush1.msra.mxu0 %v357
    %406 = vmatprep.subr.mxu0 0.0
    %407 = vmatpush1.msra.mxu0 %v356
    %408 = vmatprep.subr.mxu0 0.0
    %409 = vmatpush1.msra.mxu0 %v355
    %410 = vmatprep.subr.mxu0 0.0
    %411 = vmatpush2.msra.mxu0 0.0
    %412 = vmatprep.subr.mxu0 0.0
    %413 = vmatpush2.msra.mxu0 0.0
    %414 = vmatprep.subr.mxu0 0.0
    %415 = vmatpush2.msra.mxu0 0.0
    %416 = vmatprep.subr.mxu0 0.0
    %417 = vmatpush2.msra.mxu0 0.0
    %418 = vmatprep.subr.mxu0 0.0
    %419 = vmatpush2.msra.mxu0 0.0
    %420 = vmatprep.subr.mxu0 0.0
    %421 = vmatpush2.msra.mxu0 0.0
    %422 = vmatprep.subr.mxu0 0.0
    %423 = vmatpush2.msra.mxu0 0.0
    %424 = vmatprep.subr.mxu0 0.0
    %425 = vmatpush2.msra.mxu0 0.0
    %426 = vmatprep.subr.mxu0 0.0
    %427 = vmatpush2.msra.mxu0 0.0
    %428 = vmatprep.subr.mxu0 0.0
    %429 = vmatpush2.msra.mxu0 0.0
    %430 = vmatprep.subr.mxu0 0.0
    %431 = vmatpush2.msra.mxu0 0.0
    %432 = vmatprep.subr.mxu0 0.0
    %433 = vmatpush2.msra.mxu0 0.0
    %434 = vmatprep.subr.mxu0 0.0
    %435 = vmatpush2.msra.mxu0 0.0
    %436 = vmatprep.subr.mxu0 0.0
    %437 = vmatpush2.msra.mxu0 0.0
    %438 = vmatprep.subr.mxu0 0.0
    %439 = vmatpush2.msra.mxu0 0.0
    %440 = vmatprep.subr.mxu0 0.0
    %441 = vmatpush2.msra.mxu0 0.0
    %442 = vmatprep.mubr.f32.mxu0 0.0
    %443 = vmatmul.mubr.f32.gmra.mxu0 %v354
    %v444 = vpop.f32.mrf.mxu0
    %v445 = vadd.f32 %v376, %v444
    %v446 = vpop.f32.mrf.mxu0
    %447 = vdwg.mxu0
    %v448 = vmul.f32 %v445, 0.5
    %v449 = vmul.f32 %v445, 0.70710677
    %v450 = verf.f32.pop %v449
    %v451 = vadd.f32 %v450, 1.0
    %v452 = vmul.f32 %v448, %v451
    %v453 = vld [vmem:[#allocation10] sm:$0xff]
    %v454 = vld [vmem:[#allocation10 + $0x8] sm:$0xff]
    %v455 = vld [vmem:[#allocation10 + $0x10] sm:$0xff]
    %v456 = vld [vmem:[#allocation10 + $0x18] sm:$0xff]
    %v457 = vld [vmem:[#allocation10 + $0x20] sm:$0xff]
    %v458 = vld [vmem:[#allocation10 + $0x28] sm:$0xff]
    %v459 = vld [vmem:[#allocation10 + $0x30] sm:$0xff]
    %v460 = vld [vmem:[#allocation10 + $0x38] sm:$0xff]
    %v461 = vld [vmem:[#allocation10 + $0x40] sm:$0xff]
    %v462 = vld [vmem:[#allocation10 + $0x48] sm:$0xff]
    %v463 = vld [vmem:[#allocation10 + $0x50] sm:$0xff]
    %v464 = vld [vmem:[#allocation10 + $0x58] sm:$0xff]
    %v465 = vld [vmem:[#allocation10 + $0x60] sm:$0xff]
    %v466 = vld [vmem:[#allocation10 + $0x68] sm:$0xff]
    %v467 = vld [vmem:[#allocation10 + $0x70] sm:$0xff]
    %v468 = vld [vmem:[#allocation10 + $0x78] sm:$0xff]
    %v469 = vld [vmem:[%s8] sm:$0x1]
    %v471 = vlaneseq
    %v472 = vshrl.u32 %v471, 7
    %v473 = vsub.s32 0, %v472
    %v474 = vrot.slane %v469, %v473
    %476 = vmatprep.subr.mxu0 0.0
    %477 = vmatpush1.msra.mxu0 %v468
    %478 = vmatprep.subr.mxu0 0.0
    %479 = vmatpush1.msra.mxu0 %v467
    %480 = vmatprep.subr.mxu0 0.0
    %481 = vmatpush1.msra.mxu0 %v466
    %482 = vmatprep.subr.mxu0 0.0
    %483 = vmatpush1.msra.mxu0 %v465
    %484 = vmatprep.subr.mxu0 0.0
    %485 = vmatpush1.msra.mxu0 %v464
    %486 = vmatprep.subr.mxu0 0.0
    %487 = vmatpush1.msra.mxu0 %v463
    %488 = vmatprep.subr.mxu0 0.0
    %489 = vmatpush1.msra.mxu0 %v462
    %490 = vmatprep.subr.mxu0 0.0
    %491 = vmatpush1.msra.mxu0 %v461
    %492 = vmatprep.subr.mxu0 0.0
    %493 = vmatpush1.msra.mxu0 %v460
    %494 = vmatprep.subr.mxu0 0.0
    %495 = vmatpush1.msra.mxu0 %v459
    %496 = vmatprep.subr.mxu0 0.0
    %497 = vmatpush1.msra.mxu0 %v458
    %498 = vmatprep.subr.mxu0 0.0
    %499 = vmatpush1.msra.mxu0 %v457
    %500 = vmatprep.subr.mxu0 0.0
    %501 = vmatpush1.msra.mxu0 %v456
    %502 = vmatprep.subr.mxu0 0.0
    %503 = vmatpush1.msra.mxu0 %v455
    %504 = vmatprep.subr.mxu0 0.0
    %505 = vmatpush1.msra.mxu0 %v454
    %506 = vmatprep.subr.mxu0 0.0
    %507 = vmatpush1.msra.mxu0 %v453
    %508 = vmatprep.subr.mxu0 0.0
    %509 = vmatpush2.msra.mxu0 0.0
    %510 = vmatprep.subr.mxu0 0.0
    %511 = vmatpush2.msra.mxu0 0.0
    %512 = vmatprep.subr.mxu0 0.0
    %513 = vmatpush2.msra.mxu0 0.0
    %514 = vmatprep.subr.mxu0 0.0
    %515 = vmatpush2.msra.mxu0 0.0
    %516 = vmatprep.subr.mxu0 0.0
    %517 = vmatpush2.msra.mxu0 0.0
    %518 = vmatprep.subr.mxu0 0.0
    %519 = vmatpush2.msra.mxu0 0.0
    %520 = vmatprep.subr.mxu0 0.0
    %521 = vmatpush2.msra.mxu0 0.0
    %522 = vmatprep.subr.mxu0 0.0
    %523 = vmatpush2.msra.mxu0 0.0
    %524 = vmatprep.subr.mxu0 0.0
    %525 = vmatpush2.msra.mxu0 0.0
    %526 = vmatprep.subr.mxu0 0.0
    %527 = vmatpush2.msra.mxu0 0.0
    %528 = vmatprep.subr.mxu0 0.0
    %529 = vmatpush2.msra.mxu0 0.0
    %530 = vmatprep.subr.mxu0 0.0
    %531 = vmatpush2.msra.mxu0 0.0
    %532 = vmatprep.subr.mxu0 0.0
    %533 = vmatpush2.msra.mxu0 0.0
    %534 = vmatprep.subr.mxu0 0.0
    %535 = vmatpush2.msra.mxu0 0.0
    %536 = vmatprep.subr.mxu0 0.0
    %537 = vmatpush2.msra.mxu0 0.0
    %538 = vmatprep.subr.mxu0 0.0
    %539 = vmatpush2.msra.mxu0 0.0
    %540 = vmatprep.mubr.f32.mxu0 0.0
    %541 = vmatmul.mubr.f32.gmra.mxu0 %v452
    %v542 = vpop.f32.mrf.mxu0
    %v543 = vadd.f32 %v474, %v542
    %v544 = vpop.f32.mrf.mxu0
    %545 = vdwg.mxu0
    %v546 = vmul.f32 %v543, 0.5
    %v547 = vmul.f32 %v543, 0.70710677
    %v548 = verf.f32.pop %v547
    %v549 = vadd.f32 %v548, 1.0
    %v550 = vmul.f32 %v546, %v549
    %v551 = vld [vmem:[#allocation11] sm:$0xff]
    %v552 = vld [vmem:[#allocation11 + $0x8] sm:$0xff]
    %v553 = vld [vmem:[#allocation11 + $0x10] sm:$0xff]
    %v554 = vld [vmem:[#allocation11 + $0x18] sm:$0xff]
    %v555 = vld [vmem:[#allocation11 + $0x20] sm:$0xff]
    %v556 = vld [vmem:[#allocation11 + $0x28] sm:$0xff]
    %v557 = vld [vmem:[#allocation11 + $0x30] sm:$0xff]
    %v558 = vld [vmem:[#allocation11 + $0x38] sm:$0xff]
    %v559 = vld [vmem:[#allocation11 + $0x40] sm:$0xff]
    %v560 = vld [vmem:[#allocation11 + $0x48] sm:$0xff]
    %v561 = vld [vmem:[#allocation11 + $0x50] sm:$0xff]
    %v562 = vld [vmem:[#allocation11 + $0x58] sm:$0xff]
    %v563 = vld [vmem:[#allocation11 + $0x60] sm:$0xff]
    %v564 = vld [vmem:[#allocation11 + $0x68] sm:$0xff]
    %v565 = vld [vmem:[#allocation11 + $0x70] sm:$0xff]
    %v566 = vld [vmem:[#allocation11 + $0x78] sm:$0xff]
    %v567 = vld [vmem:[%s10] sm:$0x1]
    %v569 = vlaneseq
    %v570 = vshrl.u32 %v569, 7
    %v571 = vsub.s32 0, %v570
    %v572 = vrot.slane %v567, %v571
    %574 = vmatprep.subr.mxu0 0.0
    %575 = vmatpush1.msra.mxu0 %v566
    %576 = vmatprep.subr.mxu0 0.0
    %577 = vmatpush1.msra.mxu0 %v565
    %578 = vmatprep.subr.mxu0 0.0
    %579 = vmatpush1.msra.mxu0 %v564
    %580 = vmatprep.subr.mxu0 0.0
    %581 = vmatpush1.msra.mxu0 %v563
    %582 = vmatprep.subr.mxu0 0.0
    %583 = vmatpush1.msra.mxu0 %v562
    %584 = vmatprep.subr.mxu0 0.0
    %585 = vmatpush1.msra.mxu0 %v561
    %586 = vmatprep.subr.mxu0 0.0
    %587 = vmatpush1.msra.mxu0 %v560
    %588 = vmatprep.subr.mxu0 0.0
    %589 = vmatpush1.msra.mxu0 %v559
    %590 = vmatprep.subr.mxu0 0.0
    %591 = vmatpush1.msra.mxu0 %v558
    %592 = vmatprep.subr.mxu0 0.0
    %593 = vmatpush1.msra.mxu0 %v557
    %594 = vmatprep.subr.mxu0 0.0
    %595 = vmatpush1.msra.mxu0 %v556
    %596 = vmatprep.subr.mxu0 0.0
    %597 = vmatpush1.msra.mxu0 %v555
    %598 = vmatprep.subr.mxu0 0.0
    %599 = vmatpush1.msra.mxu0 %v554
    %600 = vmatprep.subr.mxu0 0.0
    %601 = vmatpush1.msra.mxu0 %v553
    %602 = vmatprep.subr.mxu0 0.0
    %603 = vmatpush1.msra.mxu0 %v552
    %604 = vmatprep.subr.mxu0 0.0
    %605 = vmatpush1.msra.mxu0 %v551
    %606 = vmatprep.subr.mxu0 0.0
    %607 = vmatpush2.msra.mxu0 0.0
    %608 = vmatprep.subr.mxu0 0.0
    %609 = vmatpush2.msra.mxu0 0.0
    %610 = vmatprep.subr.mxu0 0.0
    %611 = vmatpush2.msra.mxu0 0.0
    %612 = vmatprep.subr.mxu0 0.0
    %613 = vmatpush2.msra.mxu0 0.0
    %614 = vmatprep.subr.mxu0 0.0
    %615 = vmatpush2.msra.mxu0 0.0
    %616 = vmatprep.subr.mxu0 0.0
    %617 = vmatpush2.msra.mxu0 0.0
    %618 = vmatprep.subr.mxu0 0.0
    %619 = vmatpush2.msra.mxu0 0.0
    %620 = vmatprep.subr.mxu0 0.0
    %621 = vmatpush2.msra.mxu0 0.0
    %622 = vmatprep.subr.mxu0 0.0
    %623 = vmatpush2.msra.mxu0 0.0
    %624 = vmatprep.subr.mxu0 0.0
    %625 = vmatpush2.msra.mxu0 0.0
    %626 = vmatprep.subr.mxu0 0.0
    %627 = vmatpush2.msra.mxu0 0.0
    %628 = vmatprep.subr.mxu0 0.0
    %629 = vmatpush2.msra.mxu0 0.0
    %630 = vmatprep.subr.mxu0 0.0
    %631 = vmatpush2.msra.mxu0 0.0
    %632 = vmatprep.subr.mxu0 0.0
    %633 = vmatpush2.msra.mxu0 0.0
    %634 = vmatprep.subr.mxu0 0.0
    %635 = vmatpush2.msra.mxu0 0.0
    %636 = vmatprep.subr.mxu0 0.0
    %637 = vmatpush2.msra.mxu0 0.0
    %638 = vmatprep.mubr.f32.mxu0 0.0
    %639 = vmatmul.mubr.f32.gmra.mxu0 %v550
    %v640 = vpop.f32.mrf.mxu0
    %v641 = vadd.f32 %v572, %v640
    %v642 = vpop.f32.mrf.mxu0
    %643 = vdwg.mxu0
    %v644 = vmul.f32 %v641, 0.5
    %v645 = vmul.f32 %v641, 0.70710677
    %v646 = verf.f32.pop %v645
    %v647 = vadd.f32 %v646, 1.0
    %v648 = vmul.f32 %v644, %v647
    %v649 = vld [vmem:[#allocation13] sm:$0xff]
    %v650 = vld [vmem:[#allocation13 + $0x8] sm:$0xff]
    %v651 = vld [vmem:[#allocation13 + $0x10] sm:$0xff]
    %v652 = vld [vmem:[#allocation13 + $0x18] sm:$0xff]
    %v653 = vld [vmem:[#allocation13 + $0x20] sm:$0xff]
    %v654 = vld [vmem:[#allocation13 + $0x28] sm:$0xff]
    %v655 = vld [vmem:[#allocation13 + $0x30] sm:$0xff]
    %v656 = vld [vmem:[#allocation13 + $0x38] sm:$0xff]
    %v657 = vld [vmem:[#allocation13 + $0x40] sm:$0xff]
    %v658 = vld [vmem:[#allocation13 + $0x48] sm:$0xff]
    %v659 = vld [vmem:[#allocation13 + $0x50] sm:$0xff]
    %v660 = vld [vmem:[#allocation13 + $0x58] sm:$0xff]
    %v661 = vld [vmem:[#allocation13 + $0x60] sm:$0xff]
    %v662 = vld [vmem:[#allocation13 + $0x68] sm:$0xff]
    %v663 = vld [vmem:[#allocation13 + $0x70] sm:$0xff]
    %v664 = vld [vmem:[#allocation13 + $0x78] sm:$0xff]
    %v665 = vld [vmem:[%s12] sm:$0x1]
    %v667 = vlaneseq
    %v668 = vshrl.u32 %v667, 7
    %v669 = vsub.s32 0, %v668
    %v670 = vrot.slane %v665, %v669
    %672 = vmatprep.subr.mxu0 0.0
    %673 = vmatpush1.msra.mxu0 %v664
    %674 = vmatprep.subr.mxu0 0.0
    %675 = vmatpush1.msra.mxu0 %v663
    %676 = vmatprep.subr.mxu0 0.0
    %677 = vmatpush1.msra.mxu0 %v662
    %678 = vmatprep.subr.mxu0 0.0
    %679 = vmatpush1.msra.mxu0 %v661
    %680 = vmatprep.subr.mxu0 0.0
    %681 = vmatpush1.msra.mxu0 %v660
    %682 = vmatprep.subr.mxu0 0.0
    %683 = vmatpush1.msra.mxu0 %v659
    %684 = vmatprep.subr.mxu0 0.0
    %685 = vmatpush1.msra.mxu0 %v658
    %686 = vmatprep.subr.mxu0 0.0
    %687 = vmatpush1.msra.mxu0 %v657
    %688 = vmatprep.subr.mxu0 0.0
    %689 = vmatpush1.msra.mxu0 %v656
    %690 = vmatprep.subr.mxu0 0.0
    %691 = vmatpush1.msra.mxu0 %v655
    %692 = vmatprep.subr.mxu0 0.0
    %693 = vmatpush1.msra.mxu0 %v654
    %694 = vmatprep.subr.mxu0 0.0
    %695 = vmatpush1.msra.mxu0 %v653
    %696 = vmatprep.subr.mxu0 0.0
    %697 = vmatpush1.msra.mxu0 %v652
    %698 = vmatprep.subr.mxu0 0.0
    %699 = vmatpush1.msra.mxu0 %v651
    %700 = vmatprep.subr.mxu0 0.0
    %701 = vmatpush1.msra.mxu0 %v650
    %702 = vmatprep.subr.mxu0 0.0
    %703 = vmatpush1.msra.mxu0 %v649
    %704 = vmatprep.subr.mxu0 0.0
    %705 = vmatpush2.msra.mxu0 0.0
    %706 = vmatprep.subr.mxu0 0.0
    %707 = vmatpush2.msra.mxu0 0.0
    %708 = vmatprep.subr.mxu0 0.0
    %709 = vmatpush2.msra.mxu0 0.0
    %710 = vmatprep.subr.mxu0 0.0
    %711 = vmatpush2.msra.mxu0 0.0
    %712 = vmatprep.subr.mxu0 0.0
    %713 = vmatpush2.msra.mxu0 0.0
    %714 = vmatprep.subr.mxu0 0.0
    %715 = vmatpush2.msra.mxu0 0.0
    %716 = vmatprep.subr.mxu0 0.0
    %717 = vmatpush2.msra.mxu0 0.0
    %718 = vmatprep.subr.mxu0 0.0
    %719 = vmatpush2.msra.mxu0 0.0
    %720 = vmatprep.subr.mxu0 0.0
    %721 = vmatpush2.msra.mxu0 0.0
    %722 = vmatprep.subr.mxu0 0.0
    %723 = vmatpush2.msra.mxu0 0.0
    %724 = vmatprep.subr.mxu0 0.0
    %725 = vmatpush2.msra.mxu0 0.0
    %726 = vmatprep.subr.mxu0 0.0
    %727 = vmatpush2.msra.mxu0 0.0
    %728 = vmatprep.subr.mxu0 0.0
    %729 = vmatpush2.msra.mxu0 0.0
    %730 = vmatprep.subr.mxu0 0.0
    %731 = vmatpush2.msra.mxu0 0.0
    %732 = vmatprep.subr.mxu0 0.0
    %733 = vmatpush2.msra.mxu0 0.0
    %734 = vmatprep.subr.mxu0 0.0
    %735 = vmatpush2.msra.mxu0 0.0
    %736 = vmatprep.mubr.f32.mxu0 0.0
    %737 = vmatmul.mubr.f32.gmra.mxu0 %v648
    %v738 = vpop.f32.mrf.mxu0
    %v739 = vadd.f32 %v670, %v738
    %v740 = vpop.f32.mrf.mxu0
    %741 = vdwg.mxu0
    %v742 = vmul.f32 %v739, 0.5
    %v743 = vmul.f32 %v739, 0.70710677
    %v744 = verf.f32.pop %v743
    %v745 = vadd.f32 %v744, 1.0
    %v746 = vmul.f32 %v742, %v745
    %v747 = vld [vmem:[#allocation14] sm:$0xff]
    %v748 = vld [vmem:[#allocation14 + $0x8] sm:$0xff]
    %v749 = vld [vmem:[#allocation14 + $0x10] sm:$0xff]
    %v750 = vld [vmem:[#allocation14 + $0x18] sm:$0xff]
    %v751 = vld [vmem:[#allocation14 + $0x20] sm:$0xff]
    %v752 = vld [vmem:[#allocation14 + $0x28] sm:$0xff]
    %v753 = vld [vmem:[#allocation14 + $0x30] sm:$0xff]
    %v754 = vld [vmem:[#allocation14 + $0x38] sm:$0xff]
    %v755 = vld [vmem:[#allocation14 + $0x40] sm:$0xff]
    %v756 = vld [vmem:[#allocation14 + $0x48] sm:$0xff]
    %v757 = vld [vmem:[#allocation14 + $0x50] sm:$0xff]
    %v758 = vld [vmem:[#allocation14 + $0x58] sm:$0xff]
    %v759 = vld [vmem:[#allocation14 + $0x60] sm:$0xff]
    %v760 = vld [vmem:[#allocation14 + $0x68] sm:$0xff]
    %v761 = vld [vmem:[#allocation14 + $0x70] sm:$0xff]
    %v762 = vld [vmem:[#allocation14 + $0x78] sm:$0xff]
    %v763 = vld [vmem:[%s14] sm:$0x1]
    %v765 = vlaneseq
    %v766 = vshrl.u32 %v765, 7
    %v767 = vsub.s32 0, %v766
    %v768 = vrot.slane %v763, %v767
    %770 = vmatprep.subr.mxu0 0.0
    %771 = vmatpush1.msra.mxu0 %v762
    %772 = vmatprep.subr.mxu0 0.0
    %773 = vmatpush1.msra.mxu0 %v761
    %774 = vmatprep.subr.mxu0 0.0
    %775 = vmatpush1.msra.mxu0 %v760
    %776 = vmatprep.subr.mxu0 0.0
    %777 = vmatpush1.msra.mxu0 %v759
    %778 = vmatprep.subr.mxu0 0.0
    %779 = vmatpush1.msra.mxu0 %v758
    %780 = vmatprep.subr.mxu0 0.0
    %781 = vmatpush1.msra.mxu0 %v757
    %782 = vmatprep.subr.mxu0 0.0
    %783 = vmatpush1.msra.mxu0 %v756
    %784 = vmatprep.subr.mxu0 0.0
    %785 = vmatpush1.msra.mxu0 %v755
    %786 = vmatprep.subr.mxu0 0.0
    %787 = vmatpush1.msra.mxu0 %v754
    %788 = vmatprep.subr.mxu0 0.0
    %789 = vmatpush1.msra.mxu0 %v753
    %790 = vmatprep.subr.mxu0 0.0
    %791 = vmatpush1.msra.mxu0 %v752
    %792 = vmatprep.subr.mxu0 0.0
    %793 = vmatpush1.msra.mxu0 %v751
    %794 = vmatprep.subr.mxu0 0.0
    %795 = vmatpush1.msra.mxu0 %v750
    %796 = vmatprep.subr.mxu0 0.0
    %797 = vmatpush1.msra.mxu0 %v749
    %798 = vmatprep.subr.mxu0 0.0
    %799 = vmatpush1.msra.mxu0 %v748
    %800 = vmatprep.subr.mxu0 0.0
    %801 = vmatpush1.msra.mxu0 %v747
    %802 = vmatprep.subr.mxu0 0.0
    %803 = vmatpush2.msra.mxu0 0.0
    %804 = vmatprep.subr.mxu0 0.0
    %805 = vmatpush2.msra.mxu0 0.0
    %806 = vmatprep.subr.mxu0 0.0
    %807 = vmatpush2.msra.mxu0 0.0
    %808 = vmatprep.subr.mxu0 0.0
    %809 = vmatpush2.msra.mxu0 0.0
    %810 = vmatprep.subr.mxu0 0.0
    %811 = vmatpush2.msra.mxu0 0.0
    %812 = vmatprep.subr.mxu0 0.0
    %813 = vmatpush2.msra.mxu0 0.0
    %814 = vmatprep.subr.mxu0 0.0
    %815 = vmatpush2.msra.mxu0 0.0
    %816 = vmatprep.subr.mxu0 0.0
    %817 = vmatpush2.msra.mxu0 0.0
    %818 = vmatprep.subr.mxu0 0.0
    %819 = vmatpush2.msra.mxu0 0.0
    %820 = vmatprep.subr.mxu0 0.0
    %821 = vmatpush2.msra.mxu0 0.0
    %822 = vmatprep.subr.mxu0 0.0
    %823 = vmatpush2.msra.mxu0 0.0
    %824 = vmatprep.subr.mxu0 0.0
    %825 = vmatpush2.msra.mxu0 0.0
    %826 = vmatprep.subr.mxu0 0.0
    %827 = vmatpush2.msra.mxu0 0.0
    %828 = vmatprep.subr.mxu0 0.0
    %829 = vmatpush2.msra.mxu0 0.0
    %830 = vmatprep.subr.mxu0 0.0
    %831 = vmatpush2.msra.mxu0 0.0
    %832 = vmatprep.subr.mxu0 0.0
    %833 = vmatpush2.msra.mxu0 0.0
    %834 = vmatprep.mubr.f32.mxu0 0.0
    %835 = vmatmul.mubr.f32.gmra.mxu0 %v746
    %v836 = vpop.f32.mrf.mxu0
    %v837 = vadd.f32 %v768, %v836
    %v838 = vpop.f32.mrf.mxu0
    %839 = vdwg.mxu0
    %840 = vst [vmem:[#allocation16] sm:$0xff] %v837
    // Predicated region
    $region94: #{tpu_custom_call.1} parent=1 // pred_check
      _
    $region95: #{tpu_custom_call.1} parent=1 // pred_check_branch
      %842 = sbr.rel (0) target = $region97
    $region96: #{tpu_custom_call.1} parent=1 // pred_region
      %s844 = ssub.s32 128, 128
      %845 = vsyncadd [#allocation4], %s844
      %s847 = sshll.u32 [#allocation16], 4
      %s848 = int_to_ptr.vmem [resolvable:$true] %s847
      %850 = dma.vmem_to_hbm [thread:$0]  %s848, 128, %s15, [#allocation4]
    $region97: #{tpu_custom_call.1} parent=1 // pred_fallthru
      _
    // Predicated region
    $region98: #{tpu_custom_call.1} parent=1 // pred_check
      _
    $region99: #{tpu_custom_call.1} parent=1 // pred_check_branch
      %852 = sbr.rel (0) target = $region101
    $region100: #{tpu_custom_call.1} parent=1 // pred_region
      %853 = dma.done [#allocation4], 128
    $region101: #{tpu_custom_call.1} parent=1 // pred_fallthru
      _
    %854 = vsyncpa [#allocation3], 1
    %855 = vsyncpa [#allocation6], 1
    %856 = vsyncpa [#allocation9], 1
    %857 = vsyncpa [#allocation12], 1
    %858 = vsyncpa [#allocation15], 1
    %859 = vsyncpa [#allocation4], 1

</llo_original>
